<compile_context>
chip_gen: v5e
topology: v5e:2x2
jax: 0.10.0
libtpu: 0.0.40
codegen_flags: <defaults>
</compile_context>

<pallas_src>
import functools

import jax
import jax.numpy as jnp
from jax import lax
from jax.experimental import pallas as pl
from jax.experimental.pallas import tpu as pltpu


# ---------------------------------------------------------------------------
# Kernel: per-row partial sums, accumulated across the spatial grid axis.
# ---------------------------------------------------------------------------
def _combo_partials_kernel(x_ref, t_ref,
                           bce_ref, focal_ref, inter_ref, union_ref, *,
                           acc_width, n_chunks, tile_cols, n_cols_total,
                           needs_col_mask, assume_binary_targets):
    # x_ref / t_ref : VMEM (tile_rows, tile_cols) blocks of the (B*C, H*W) slabs
    # *_ref outputs : VMEM (tile_rows, acc_width) per-lane partial sums; they stay
    #                 resident across the spatial (j) axis and act as accumulators.
    j = pl.program_id(1)

    @pl.when(j == 0)
    def _init():
        zeros = jnp.zeros(bce_ref.shape, jnp.float32)
        bce_ref[...] = zeros
        focal_ref[...] = zeros
        inter_ref[...] = zeros
        union_ref[...] = zeros

    rows = bce_ref.shape[0]

    def chunk_partials(off):
        x = x_ref[:, pl.ds(off, acc_width)].astype(jnp.float32)
        t = t_ref[:, pl.ds(off, acc_width)].astype(jnp.float32)
        s = jax.nn.sigmoid(x)

        # BCE (== nn.BCELoss()(sigmoid(x), t)), stable logits form:
        # log1p(exp(-|x|)) == -log(sigmoid(|x|)) == -log(max(s, 1-s))   (reuses s, 1 log)
        bce_elem = jnp.maximum(x, 0.0) - x * t - jnp.log(jnp.maximum(s, 1.0 - s))

        if assume_binary_targets:
            # For t in {0,1}: -log(pt) == bce_elem and 1-pt == t + s - 2ts.
            one_m_pt = t + s - 2.0 * t * s
            focal_elem = (one_m_pt * one_m_pt) * bce_elem
        else:
            # FocalLoss2d, gamma = 2.  Factored pt (no cancellation for saturated preds).
            eps_f = 1e-8
            sc = jnp.clip(s, eps_f, 1.0 - eps_f)
            tc = jnp.clip(t, eps_f, 1.0 - eps_f)
            pt = (1.0 - tc) * (1.0 - sc) + tc * sc
            one_m_pt = 1.0 - pt
            focal_elem = (one_m_pt * one_m_pt) * (-jnp.log(pt))

        inter_elem = s * t
        union_elem = s + t

        if needs_col_mask:
            # Tail tile past H*W: OOB input lanes hold unspecified data -> mask them.
            col = (j * tile_cols + off
                   + lax.broadcasted_iota(jnp.int32, (rows, acc_width), 1))
            valid = col < n_cols_total
            bce_elem = jnp.where(valid, bce_elem, 0.0)
            focal_elem = jnp.where(valid, focal_elem, 0.0)
            inter_elem = jnp.where(valid, inter_elem, 0.0)
            union_elem = jnp.where(valid, union_elem, 0.0)

        return bce_elem, focal_elem, inter_elem, union_elem

    if n_chunks == 1:
        bce_p, focal_p, inter_p, union_p = chunk_partials(0)
    else:
        def body(c, carry):
            off = pl.multiple_of(c * acc_width, acc_width)
            parts = chunk_partials(off)
            return tuple(a + p for a, p in zip(carry, parts))

        init = tuple(jnp.zeros((rows, acc_width), jnp.float32) for _ in range(4))
        bce_p, focal_p, inter_p, union_p = lax.fori_loop(
            0, n_chunks, body, init, unroll=(n_chunks <= 8))

    bce_ref[...] += bce_p
    focal_ref[...] += focal_p
    inter_ref[...] += inter_p
    union_ref[...] += union_p


# ---------------------------------------------------------------------------
# Tiling helpers.
# ---------------------------------------------------------------------------
def _sublane_pack(dtype):
    # dense-sublane row multiple: f32 -> 8, bf16 -> 16, int8/uint8 -> 32
    return max(1, 32 // (jnp.dtype(dtype).itemsize * 8)) * 8


def _target_block_bytes():
    # v7x-safe default (64 MiB VMEM per TC); larger blocks only on 128 MiB chips.
    try:
        info = pltpu.get_tpu_info()
        vmem = getattr(info, "vmem_capacity_bytes", None)
        if vmem is not None and vmem >= 96 * 1024 * 1024:
            return 4 * 1024 * 1024
    except Exception:
        pass
    return 2 * 1024 * 1024


def _largest_aligned_divisor(total, multiple, cap):
    """Largest divisor of `total` that is a multiple of `multiple` and <= cap, or None."""
    best = None
    t = multiple
    limit = min(total, cap)
    while t <= limit:
        if total % t == 0:
            best = t
        t += multiple
    return best


_SUPPORTED = ("bce", "dice", "focal")


# ---------------------------------------------------------------------------
# Wrapper: ComboLoss.forward for activation='sigmoid', per_image=False.
# ---------------------------------------------------------------------------
def combo_loss(outputs_nchw, targets_nchw, weights=None, channel_weights=None,
               assume_binary_targets=False, tile_rows=None, tile_cols=None,
               acc_width=None):
    if weights is None:
        weights = {"bce": 1.0, "dice": 1.0, "focal": 2.0}
    for k, v in weights.items():
        if v and k not in _SUPPORTED:
            # TODO(synk): lovasz/lovasz_sigmoid/jaccard/tversky/ce/focal_frog/focal_git
            #             are not implemented (all carry zero weight in this config).
            raise NotImplementedError(f"ComboLoss term '{k}' is not implemented")

    B, C, H, W = outputs_nchw.shape
    if channel_weights is None:
        channel_weights = [1.0] * C
    assert len(channel_weights) >= C
    R, N = B * C, H * W

    # Free (reshape-only) layout: row r -> (batch r // C, channel r % C). No transpose.
    x = outputs_nchw.reshape(R, N)
    t = targets_nchw.reshape(R, N)
    max_item = max(x.dtype.itemsize, t.dtype.itemsize)

    # Row tile: multiple of the widest sublane packing (f32: 8, bf16: 16, int8: 32).
    pack = max(_sublane_pack(x.dtype), _sublane_pack(t.dtype))
    if tile_rows is None:
        tile_rows = pack if R >= pack else R
        if R % tile_rows != 0 and R <= 4 * pack:
            tile_rows = R                       # tiny: one full-extent row block
    assert tile_rows % 8 == 0 or tile_rows == R

    # Column tile: multiple of 128 lanes sized toward the chip-gated byte budget.
    target_bytes = _target_block_bytes()
    cap = max(128, target_bytes // (tile_rows * max_item))
    if tile_cols is None:
        if N <= 128:
            tile_cols = N
        else:
            tile_cols = _largest_aligned_divisor(N, 128, cap)
            if tile_cols is None:
                # no aligned divisor under the budget -> masked tail tiles (cdiv grid)
                tile_cols = max(128, (min(cap, N) // 128) * 128)
    assert tile_cols % 128 == 0 or tile_cols == N
    needs_col_mask = (N % tile_cols) != 0

    # Per-lane accumulator width: keep the in-tile chunk carries to a few vregs each.
    if acc_width is None:
        if tile_cols % 128 != 0:
            acc_width = tile_cols
        else:
            ideal = 512 if tile_rows <= 8 else (256 if tile_rows <= 16 else 128)
            acc_width = max(w for w in (512, 256, 128)
                            if w <= ideal and tile_cols % w == 0)
    assert tile_cols % acc_width == 0
    assert acc_width % 128 == 0 or acc_width == tile_cols
    n_chunks = tile_cols // acc_width

    grid = (pl.cdiv(R, tile_rows), pl.cdiv(N, tile_cols))

    kernel = functools.partial(
        _combo_partials_kernel,
        acc_width=acc_width, n_chunks=n_chunks, tile_cols=tile_cols,
        n_cols_total=N, needs_col_mask=needs_col_mask,
        assume_binary_targets=assume_binary_targets)

    in_spec = pl.BlockSpec((tile_rows, tile_cols), lambda i, j: (i, j))
    part_spec = pl.BlockSpec((tile_rows, acc_width), lambda i, j: (i, 0))
    part_shape = jax.ShapeDtypeStruct((R, acc_width), jnp.float32)

    block_in = tile_rows * tile_cols * (x.dtype.itemsize + t.dtype.itemsize)
    block_out = 4 * tile_rows * acc_width * 4
    vmem_limit = int(min(48 * 2**20, 2 * block_in + 2 * block_out + 16 * 2**20))

    bce_p, focal_p, inter_p, union_p = pl.pallas_call(
        kernel,
        out_shape=(part_shape, part_shape, part_shape, part_shape),
        grid_spec=pltpu.PrefetchScalarGridSpec(
            num_scalar_prefetch=0,
            grid=grid,
            in_specs=[in_spec, in_spec],
            out_specs=[part_spec, part_spec, part_spec, part_spec],
        ),
        compiler_params=pltpu.CompilerParams(
            # row-tile axis is parallel (megacore / v7x 2-TC sharding); the spatial
            # axis is the reduction the output accumulators live across.
            dimension_semantics=("parallel", "arbitrary"),
            vmem_limit_bytes=vmem_limit),
    )(x, t)

    # Tiny finalize in JAX (keeps the kernel free of cross-lane reduces / scalar output).
    inv_total = 1.0 / float(R * N)
    bce = jnp.sum(bce_p) * inv_total
    focal = jnp.sum(focal_p) * inv_total

    eps_d = 1e-5
    inter_c = jnp.sum(inter_p.reshape(B, C, acc_width), axis=(0, 2))
    union_c = jnp.sum(union_p.reshape(B, C, acc_width), axis=(0, 2))
    dice_c = 1.0 - (2.0 * inter_c + eps_d) / (union_c + eps_d)
    cw = jnp.asarray([float(w) for w in channel_weights[:C]], dtype=jnp.float32)
    dice = jnp.dot(cw, dice_c)

    loss = (float(weights.get("bce", 0.0) or 0.0) * bce
            + float(weights.get("dice", 0.0) or 0.0) * dice
            + float(weights.get("focal", 0.0) or 0.0) * focal)
    return jnp.maximum(loss, 1e-5)          # .clamp(min=1e-5)


# ---------------------------------------------------------------------------
# Pure-JAX reference of the same forward pass (in-script sanity check).
# ---------------------------------------------------------------------------
def _reference_combo_loss(outputs, targets, weights, channel_weights):
    x = outputs.astype(jnp.float32)
    t = targets.astype(jnp.float32)
    s = jax.nn.sigmoid(x)
    bce = jnp.mean(jnp.maximum(x, 0.0) - x * t + jnp.log1p(jnp.exp(-jnp.abs(x))))
    sc = jnp.clip(s, 1e-8, 1.0 - 1e-8)
    tc = jnp.clip(t, 1e-8, 1.0 - 1e-8)
    pt = (1.0 - tc) * (1.0 - sc) + tc * sc
    focal = jnp.mean(-((1.0 - pt) ** 2) * jnp.log(pt))
    dice = 0.0
    for c in range(x.shape[1]):
        inter = jnp.sum(s[:, c] * t[:, c])
        union = jnp.sum(s[:, c]) + jnp.sum(t[:, c]) + 1e-5
        dice += channel_weights[c] * (1.0 - (2.0 * inter + 1e-5) / union)
    loss = weights["bce"] * bce + weights["dice"] * dice + weights["focal"] * focal
    return jnp.maximum(loss, 1e-5)


if __name__ == "__main__":
    key = jax.random.PRNGKey(0)
    k1, k2, k3, k4 = jax.random.split(key, 4)
    weights = {"bce": 1.0, "dice": 1.0, "focal": 2.0}
    channel_weights = [1.0, 1.0, 1.0, 1.0]

    # --- main shape (B, C, H, W) = (2, 4, 16, 16) -------------------------------------
    B, C, H, W = 2, 4, 16, 16
    logits = jax.random.normal(k1, (B, C, H, W), dtype=jnp.float32)
    masks_f32 = (jax.random.uniform(k2, (B, C, H, W)) < 0.5).astype(jnp.float32)
    masks_bf16 = masks_f32.astype(jnp.bfloat16)     # exact for {0,1}; halves target HBM bytes

    ref = float(_reference_combo_loss(logits, masks_f32, weights, channel_weights))

    results = []
    # default tiling (single block)
    results.append(combo_loss(logits, masks_bf16, weights, channel_weights))
    # 2-step grid along the spatial (reduction) axis: exercises accumulator revisits
    results.append(combo_loss(logits, masks_bf16, weights, channel_weights, tile_cols=128))
    # in-tile chunk loop (n_chunks=2): exercises the fori_loop / carry path
    results.append(combo_loss(logits, masks_bf16, weights, channel_weights,
                              tile_cols=256, acc_width=128))
    # binary-target fast path (one fewer EUP log per element)
    results.append(combo_loss(logits, masks_bf16, weights, channel_weights,
                              assume_binary_targets=True))
    for r in results:
        jax.block_until_ready(r)
        got = float(r)
        assert abs(got - ref) <= 1e-4 * (1.0 + abs(ref)), (got, ref)

    # --- ragged spatial shape: exercises the masked-tail (non-divisible) column path ---
    B2, C2, H2, W2 = 1, 4, 17, 19
    logits2 = jax.random.normal(k3, (B2, C2, H2, W2), dtype=jnp.float32)
    masks2_f32 = (jax.random.uniform(k4, (B2, C2, H2, W2)) < 0.5).astype(jnp.float32)
    ref2 = float(_reference_combo_loss(logits2, masks2_f32, weights, channel_weights))
    got2 = combo_loss(logits2, masks2_f32.astype(jnp.bfloat16), weights, channel_weights)
    jax.block_until_ready(got2)
    assert abs(float(got2) - ref2) <= 1e-4 * (1.0 + abs(ref2)), (float(got2), ref2)

    print("KERNEL_OK")
</pallas_src>

<mosaic_0001>
module attributes {stable_mosaic.version = 11 : i64} {
  func.func @_combo_partials_kernel(%arg0: i32, %arg1: i32, %arg2: memref<8x256xf32, #tpu.memory_space<vmem>>, %arg3: memref<8x256xbf16, #tpu.memory_space<vmem>>, %arg4: memref<8x256xf32, #tpu.memory_space<vmem>>, %arg5: memref<8x256xf32, #tpu.memory_space<vmem>>, %arg6: memref<8x256xf32, #tpu.memory_space<vmem>>, %arg7: memref<8x256xf32, #tpu.memory_space<vmem>>) attributes {dimension_semantics = [#tpu.dimension_semantics<parallel>, #tpu.dimension_semantics<arbitrary>], iteration_bounds = array<i64: 1, 1>, scalar_prefetch = 0 : i64, scratch_operands = 0 : i64, tpu.core_type = #tpu.core_type<tc>, window_params = [{transform_indices = @transform_0, window_bounds = array<i64: 8, 256>}, {transform_indices = @transform_1, window_bounds = array<i64: 8, 256>}, {transform_indices = @transform_2, window_bounds = array<i64: 8, 256>}, {transform_indices = @transform_3, window_bounds = array<i64: 8, 256>}, {transform_indices = @transform_4, window_bounds = array<i64: 8, 256>}, {transform_indices = @transform_5, window_bounds = array<i64: 8, 256>}]} {
    %c0_i32 = arith.constant 0 : i32
    %0 = arith.cmpi eq, %arg1, %c0_i32 : i32
    %1 = arith.extui %0 : i1 to i32
    %c0_i32_0 = arith.constant 0 : i32
    %2 = arith.cmpi ne, %1, %c0_i32_0 : i32
    scf.if %2 {
      %cst_30 = arith.constant 0.000000e+00 : f32
      %56 = vector.broadcast %cst_30 : f32 to vector<8x256xf32>
      %c0_31 = arith.constant 0 : index
      %c0_32 = arith.constant 0 : index
      %57 = vector.load %arg4[%c0_31, %c0_32] : memref<8x256xf32, #tpu.memory_space<vmem>>, vector<8x256xf32>
      tpu.vector_store %arg4[%c0_31, %c0_32], %56 {strides = array<i32>} : memref<8x256xf32, #tpu.memory_space<vmem>>, vector<8x256xf32>,
      %c0_33 = arith.constant 0 : index
      %c0_34 = arith.constant 0 : index
      %58 = vector.load %arg5[%c0_33, %c0_34] : memref<8x256xf32, #tpu.memory_space<vmem>>, vector<8x256xf32>
      tpu.vector_store %arg5[%c0_33, %c0_34], %56 {strides = array<i32>} : memref<8x256xf32, #tpu.memory_space<vmem>>, vector<8x256xf32>,
      %c0_35 = arith.constant 0 : index
      %c0_36 = arith.constant 0 : index
      %59 = vector.load %arg6[%c0_35, %c0_36] : memref<8x256xf32, #tpu.memory_space<vmem>>, vector<8x256xf32>
      tpu.vector_store %arg6[%c0_35, %c0_36], %56 {strides = array<i32>} : memref<8x256xf32, #tpu.memory_space<vmem>>, vector<8x256xf32>,
      %c0_37 = arith.constant 0 : index
      %c0_38 = arith.constant 0 : index
      %60 = vector.load %arg7[%c0_37, %c0_38] : memref<8x256xf32, #tpu.memory_space<vmem>>, vector<8x256xf32>
      tpu.vector_store %arg7[%c0_37, %c0_38], %56 {strides = array<i32>} : memref<8x256xf32, #tpu.memory_space<vmem>>, vector<8x256xf32>,
    } else {
    }
    %c0 = arith.constant 0 : index
    %c0_1 = arith.constant 0 : index
    %3 = vector.load %arg2[%c0, %c0_1] : memref<8x256xf32, #tpu.memory_space<vmem>>, vector<8x256xf32>
    %c0_2 = arith.constant 0 : index
    %c0_3 = arith.constant 0 : index
    %4 = vector.load %arg3[%c0_2, %c0_3] : memref<8x256xbf16, #tpu.memory_space<vmem>>, vector<8x256xbf16>
    %5 = arith.extf %4 : vector<8x256xbf16> to vector<8x256xf32>
    %6 = arith.negf %3 : vector<8x256xf32>
    %7 = math.exp %6 : vector<8x256xf32>
    %cst = arith.constant 1.000000e+00 : f32
    %8 = vector.broadcast %cst : f32 to vector<8x256xf32>
    %9 = arith.addf %8, %7 : vector<8x256xf32>
    %10 = arith.divf %8, %9 : vector<8x256xf32>
    %cst_4 = arith.constant 0.000000e+00 : f32
    %11 = vector.broadcast %cst_4 : f32 to vector<8x256xf32>
    %12 = arith.maximumf %3, %11 : vector<8x256xf32>
    %13 = arith.mulf %3, %5 : vector<8x256xf32>
    %14 = arith.subf %12, %13 : vector<8x256xf32>
    %cst_5 = arith.constant 1.000000e+00 : f32
    %15 = vector.broadcast %cst_5 : f32 to vector<8x256xf32>
    %16 = arith.subf %15, %10 : vector<8x256xf32>
    %17 = arith.maximumf %10, %16 : vector<8x256xf32>
    %18 = math.log %17 : vector<8x256xf32>
    %19 = arith.subf %14, %18 : vector<8x256xf32>
    %cst_6 = arith.constant 9.99999993E-9 : f32
    %cst_7 = arith.constant 1.000000e+00 : f32
    %20 = vector.broadcast %cst_6 : f32 to vector<8x256xf32>
    %21 = arith.maximumf %20, %10 : vector<8x256xf32>
    %22 = vector.broadcast %cst_7 : f32 to vector<8x256xf32>
    %23 = arith.minimumf %22, %21 : vector<8x256xf32>
    %cst_8 = arith.constant 9.99999993E-9 : f32
    %cst_9 = arith.constant 1.000000e+00 : f32
    %24 = vector.broadcast %cst_8 : f32 to vector<8x256xf32>
    %25 = arith.maximumf %24, %5 : vector<8x256xf32>
    %26 = vector.broadcast %cst_9 : f32 to vector<8x256xf32>
    %27 = arith.minimumf %26, %25 : vector<8x256xf32>
    %cst_10 = arith.constant 1.000000e+00 : f32
    %28 = vector.broadcast %cst_10 : f32 to vector<8x256xf32>
    %29 = arith.subf %28, %27 : vector<8x256xf32>
    %cst_11 = arith.constant 1.000000e+00 : f32
    %30 = vector.broadcast %cst_11 : f32 to vector<8x256xf32>
    %31 = arith.subf %30, %23 : vector<8x256xf32>
    %32 = arith.mulf %29, %31 : vector<8x256xf32>
    %33 = arith.mulf %27, %23 : vector<8x256xf32>
    %34 = arith.addf %32, %33 : vector<8x256xf32>
    %cst_12 = arith.constant 1.000000e+00 : f32
    %35 = vector.broadcast %cst_12 : f32 to vector<8x256xf32>
    %36 = arith.subf %35, %34 : vector<8x256xf32>
    %37 = arith.mulf %36, %36 : vector<8x256xf32>
    %38 = math.log %34 : vector<8x256xf32>
    %cst_13 = arith.constant 0.000000e+00 : f32
    %39 = vector.broadcast %cst_13 : f32 to vector<8x256xf32>
    %40 = arith.subf %39, %38 : vector<8x256xf32>
    %41 = arith.mulf %37, %40 : vector<8x256xf32>
    %42 = arith.mulf %10, %5 : vector<8x256xf32>
    %43 = arith.addf %10, %5 : vector<8x256xf32>
    %c0_14 = arith.constant 0 : index
    %c0_15 = arith.constant 0 : index
    %44 = vector.load %arg4[%c0_14, %c0_15] : memref<8x256xf32, #tpu.memory_space<vmem>>, vector<8x256xf32>
    %45 = arith.addf %44, %19 : vector<8x256xf32>
    %c0_16 = arith.constant 0 : index
    %c0_17 = arith.constant 0 : index
    %46 = vector.load %arg4[%c0_16, %c0_17] : memref<8x256xf32, #tpu.memory_space<vmem>>, vector<8x256xf32>
    tpu.vector_store %arg4[%c0_16, %c0_17], %45 {strides = array<i32>} : memref<8x256xf32, #tpu.memory_space<vmem>>, vector<8x256xf32>,
    %c0_18 = arith.constant 0 : index
    %c0_19 = arith.constant 0 : index
    %47 = vector.load %arg5[%c0_18, %c0_19] : memref<8x256xf32, #tpu.memory_space<vmem>>, vector<8x256xf32>
    %48 = arith.addf %47, %41 : vector<8x256xf32>
    %c0_20 = arith.constant 0 : index
    %c0_21 = arith.constant 0 : index
    %49 = vector.load %arg5[%c0_20, %c0_21] : memref<8x256xf32, #tpu.memory_space<vmem>>, vector<8x256xf32>
    tpu.vector_store %arg5[%c0_20, %c0_21], %48 {strides = array<i32>} : memref<8x256xf32, #tpu.memory_space<vmem>>, vector<8x256xf32>,
    %c0_22 = arith.constant 0 : index
    %c0_23 = arith.constant 0 : index
    %50 = vector.load %arg6[%c0_22, %c0_23] : memref<8x256xf32, #tpu.memory_space<vmem>>, vector<8x256xf32>
    %51 = arith.addf %50, %42 : vector<8x256xf32>
    %c0_24 = arith.constant 0 : index
    %c0_25 = arith.constant 0 : index
    %52 = vector.load %arg6[%c0_24, %c0_25] : memref<8x256xf32, #tpu.memory_space<vmem>>, vector<8x256xf32>
    tpu.vector_store %arg6[%c0_24, %c0_25], %51 {strides = array<i32>} : memref<8x256xf32, #tpu.memory_space<vmem>>, vector<8x256xf32>,
    %c0_26 = arith.constant 0 : index
    %c0_27 = arith.constant 0 : index
    %53 = vector.load %arg7[%c0_26, %c0_27] : memref<8x256xf32, #tpu.memory_space<vmem>>, vector<8x256xf32>
    %54 = arith.addf %53, %43 : vector<8x256xf32>
    %c0_28 = arith.constant 0 : index
    %c0_29 = arith.constant 0 : index
    %55 = vector.load %arg7[%c0_28, %c0_29] : memref<8x256xf32, #tpu.memory_space<vmem>>, vector<8x256xf32>
    tpu.vector_store %arg7[%c0_28, %c0_29], %54 {strides = array<i32>} : memref<8x256xf32, #tpu.memory_space<vmem>>, vector<8x256xf32>,
    return
  }
  func.func @transform_0(%arg0: i32, %arg1: i32) -> (i32, i32) {
    %c0_i32 = arith.constant 0 : i32
    return %arg0, %arg1 : i32, i32
  }
  func.func @transform_1(%arg0: i32, %arg1: i32) -> (i32, i32) {
    %c0_i32 = arith.constant 0 : i32
    return %arg0, %arg1 : i32, i32
  }
  func.func @transform_2(%arg0: i32, %arg1: i32) -> (i32, i32) {
    %c0_i32 = arith.constant 0 : i32
    %c0_i32_0 = arith.constant 0 : i32
    return %arg0, %c0_i32 : i32, i32
  }
  func.func @transform_3(%arg0: i32, %arg1: i32) -> (i32, i32) {
    %c0_i32 = arith.constant 0 : i32
    %c0_i32_0 = arith.constant 0 : i32
    return %arg0, %c0_i32 : i32, i32
  }
  func.func @transform_4(%arg0: i32, %arg1: i32) -> (i32, i32) {
    %c0_i32 = arith.constant 0 : i32
    %c0_i32_0 = arith.constant 0 : i32
    return %arg0, %c0_i32 : i32, i32
  }
  func.func @transform_5(%arg0: i32, %arg1: i32) -> (i32, i32) {
    %c0_i32 = arith.constant 0 : i32
    %c0_i32_0 = arith.constant 0 : i32
    return %arg0, %c0_i32 : i32, i32
  }
}

</mosaic_0001>

<llo_original>
// kernel: tpu_custom_call.1
$region0: #{tpu_custom_call.1}
  #allocation0 [shape = 'u32[]', space=smem, size = 0x4, offset = 0x4, fixed_abs, tag = 'smem constant byte address 0x4 - core index']
  #allocation1 [shape = 'u32[72,128]{1,0:T(1,128)}', space=vmem, size = 0x9000, scoped, tag = 'internal scratch']
  %s0 = inlined_call_operand.hbm [shape: f32[8,256], index: 0, kind: input, shape index: {}]
  %s1 = inlined_call_operand.hbm [shape: bf16[8,256], index: 1, kind: input, shape index: {}]
  %s2 = inlined_call_operand.hbm [shape: f32[8,256], index: 2, kind: output, shape index: {0}]
  %s3 = inlined_call_operand.hbm [shape: f32[8,256], index: 3, kind: output, shape index: {1}]
  %s4 = inlined_call_operand.hbm [shape: f32[8,256], index: 4, kind: output, shape index: {2}]
  %s5 = inlined_call_operand.hbm [shape: f32[8,256], index: 5, kind: output, shape index: {3}]
  %6 = xla_tuple %s2, %s3, %s4, %s5
  %s7 = sld [smem:[#allocation0]]
  $region54: #{tpu_custom_call.1} parent=0
    _
  %s9 = ssub.s32 1, %s7
  %s10 = scalar_select 0, %s9, %s7
  $region1: #{tpu_custom_call.1} parent=0
    #allocation2 [shape = 'u8[8192]{0}', space=vmem, size = 0x2000, scoped, tag = 'input window, operand 0, single buffered']
    #allocation3 [shape = 's32[1]{0}', space=sflag, size = 0x4, scoped, tag = 'scoped memory for tpu_custom_call.1']
    #allocation4 [shape = 's32[1]{0}', space=sflag, size = 0x4, scoped, tag = 'scoped memory for tpu_custom_call.1']
    #allocation5 [shape = 'u8[4096]{0}', space=vmem, size = 0x1000, scoped, tag = 'input window, operand 1, single buffered']
    #allocation6 [shape = 's32[1]{0}', space=sflag, size = 0x4, scoped, tag = 'scoped memory for tpu_custom_call.1']
    #allocation7 [shape = 'u8[8192]{0}', space=vmem, size = 0x2000, scoped, tag = 'output window, operand 0, single buffered']
    #allocation8 [shape = 'u8[8192]{0}', space=vmem, size = 0x2000, scoped, tag = 'output window, operand 1, single buffered']
    #allocation9 [shape = 's32[1]{0}', space=sflag, size = 0x4, scoped, tag = 'scoped memory for tpu_custom_call.1']
    #allocation10 [shape = 'u8[8192]{0}', space=vmem, size = 0x2000, scoped, tag = 'output window, operand 2, single buffered']
    #allocation11 [shape = 'u8[8192]{0}', space=vmem, size = 0x2000, scoped, tag = 'output window, operand 3, single buffered']
    #allocation12 [shape = 's32[1]{0}', space=sflag, size = 0x4, scoped, tag = 'scoped memory for tpu_custom_call.1']
    %11 = vsyncpa [#allocation3], 0
    %12 = vsyncpa [#allocation6], 0
    %13 = vsyncpa [#allocation4], 0
    %14 = vsyncpa [#allocation9], 0
    %15 = vsyncpa [#allocation12], 0
    // Predicated region
    $region2: #{tpu_custom_call.1} parent=1 // pred_check
      _
    $region3: #{tpu_custom_call.1} parent=1 // pred_check_branch
      %17 = sbr.rel (0) target = $region5
    $region4: #{tpu_custom_call.1} parent=1 // pred_region
      %19 = vsyncadd [#allocation3], 0
      %s21 = sshll.u32 %s0, 4
      %s22 = int_to_ptr.hbm [resolvable:$true] %s21
      %s23 = sshll.u32 [#allocation2], 4
      %s24 = int_to_ptr.vmem [resolvable:$true] %s23
      %26 = dma.hbm_to_vmem [thread:$0]  %s22, 256, %s24, [#allocation3]
    $region5: #{tpu_custom_call.1} parent=1 // pred_fallthru
      _
    // Predicated region
    $region6: #{tpu_custom_call.1} parent=1 // pred_check
      _
    $region7: #{tpu_custom_call.1} parent=1 // pred_check_branch
      %28 = sbr.rel (0) target = $region9
    $region8: #{tpu_custom_call.1} parent=1 // pred_region
      %30 = vsyncadd [#allocation6], 0
      %s32 = sshll.u32 %s1, 4
      %s33 = int_to_ptr.hbm [resolvable:$true] %s32
      %s34 = sshll.u32 [#allocation5], 4
      %s35 = int_to_ptr.vmem [resolvable:$true] %s34
      %37 = dma.hbm_to_vmem [thread:$0]  %s33, 128, %s35, [#allocation6]
    $region9: #{tpu_custom_call.1} parent=1 // pred_fallthru
      _
    // Predicated region
    $region10: #{tpu_custom_call.1} parent=1 // pred_check
      _
    $region11: #{tpu_custom_call.1} parent=1 // pred_check_branch
      %39 = sbr.rel (0) target = $region13
    $region12: #{tpu_custom_call.1} parent=1 // pred_region
      %41 = dma.done [#allocation3], 256
    $region13: #{tpu_custom_call.1} parent=1 // pred_fallthru
      _
    // Predicated region
    $region14: #{tpu_custom_call.1} parent=1 // pred_check
      _
    $region15: #{tpu_custom_call.1} parent=1 // pred_check_branch
      %43 = sbr.rel (0) target = $region17
    $region16: #{tpu_custom_call.1} parent=1 // pred_region
      %45 = dma.done [#allocation6], 128
    $region17: #{tpu_custom_call.1} parent=1 // pred_fallthru
      _
    %p46 = scmp.eq.s32.totalorder 0, 0
    // Predicated region
    $region18: #{tpu_custom_call.1} parent=1 // pred_check
      %p47 = pneg %p46
    $region19: #{tpu_custom_call.1} parent=1 // pred_check_branch
      %49 = sbr.rel (%p47) target = $region21
    $region20: #{tpu_custom_call.1} parent=1 // pred_region
      %50 = vst [vmem:[#allocation7] sm:$0xff] 0.0
      %51 = vst [vmem:[#allocation7 + $0x8] sm:$0xff] 0.0
      %52 = vst [vmem:[#allocation8] sm:$0xff] 0.0
      %53 = vst [vmem:[#allocation8 + $0x8] sm:$0xff] 0.0
      %54 = vst [vmem:[#allocation10] sm:$0xff] 0.0
      %55 = vst [vmem:[#allocation10 + $0x8] sm:$0xff] 0.0
      %56 = vst [vmem:[#allocation11] sm:$0xff] 0.0
      %57 = vst [vmem:[#allocation11 + $0x8] sm:$0xff] 0.0
    $region21: #{tpu_custom_call.1} parent=1 // pred_fallthru
      _
    %v58 = vld [vmem:[#allocation2] sm:$0xff]
    %v59 = vld [vmem:[#allocation2 + $0x8] sm:$0xff]
    %v60 = vld [vmem:[#allocation5] sm:$0xff]
    %v61 = vunpack.c.l.bf16 %v60
    %v62 = vunpack.c.h.bf16 %v60
    %v63 = vxor.u32 %v58, 2147483648
    %v64 = vxor.u32 %v59, 2147483648
    %v65 = vmul.f32 %v63, 1.442695
    %v66 = vpow.pop %v65
    %v67 = vmul.f32 %v64, 1.442695
    %v68 = vpow.pop %v67
    %v69 = vadd.f32 %v66, 1.0
    %v70 = vadd.f32 %v68, 1.0
    %v71 = vrcp.pop %v69
    %v72 = vmul.f32 %v69, %v71
    %v73 = vsub.f32 1.0, %v72
    %v74 = vmul.f32 %v71, %v73
    %v75 = vadd.f32 %v71, %v74
    %vm76 = vweird.f32 %v69
    %vm77 = vweird.f32 %v71
    %vm78 = vmor %vm76, %vm77
    %v79 = vsel %vm78, %v71, %v75
    %v80 = vand.u32 2147483647, %v69
    %vm81 = vcmp.eq.f32.partialorder %v80, 8.507059e+37
    %v82 = vand.u32 %v69, 2147483648
    %v83 = vor.u32 1.1754944e-38, %v82
    %v84 = vsel %vm81, %v83, %v79
    %v85 = vmul.f32 1.0, %v84
    %v86 = vrcp.pop %v70
    %v87 = vmul.f32 %v70, %v86
    %v88 = vsub.f32 1.0, %v87
    %v89 = vmul.f32 %v86, %v88
    %v90 = vadd.f32 %v86, %v89
    %vm91 = vweird.f32 %v70
    %vm92 = vweird.f32 %v86
    %vm93 = vmor %vm91, %vm92
    %v94 = vsel %vm93, %v86, %v90
    %v95 = vand.u32 2147483647, %v70
    %vm96 = vcmp.eq.f32.partialorder %v95, 8.507059e+37
    %v97 = vand.u32 %v70, 2147483648
    %v98 = vor.u32 1.1754944e-38, %v97
    %v99 = vsel %vm96, %v98, %v94
    %v100 = vmul.f32 1.0, %v99
    %v101 = vmax.f32 %v58, 0.0
    %v102 = vmax.f32 %v59, 0.0
    %v103 = vmul.f32 %v58, %v61
    %v104 = vmul.f32 %v59, %v62
    %v105 = vsub.f32 %v101, %v103
    %v106 = vsub.f32 %v102, %v104
    %v107 = vsub.f32 1.0, %v85
    %v108 = vsub.f32 1.0, %v100
    %v109 = vmax.f32 %v85, %v107
    %v110 = vmax.f32 %v100, %v108
    %v111 = vlog2.pop %v109
    %v112 = vmul.f32 %v111, 0.6931472
    %v113 = vlog2.pop %v110
    %v114 = vmul.f32 %v113, 0.6931472
    %v115 = vsub.f32 %v105, %v112
    %v116 = vsub.f32 %v106, %v114
    %v117 = vmax.f32 %v85, 1e-08
    %v118 = vmax.f32 %v100, 1e-08
    %v119 = vmin.f32 %v117, 1.0
    %v120 = vmin.f32 %v118, 1.0
    %v121 = vmax.f32 %v61, 1e-08
    %v122 = vmax.f32 %v62, 1e-08
    %v123 = vmin.f32 %v121, 1.0
    %v124 = vmin.f32 %v122, 1.0
    %v125 = vsub.f32 1.0, %v123
    %v126 = vsub.f32 1.0, %v124
    %v127 = vsub.f32 1.0, %v119
    %v128 = vsub.f32 1.0, %v120
    %v129 = vmul.f32 %v125, %v127
    %v130 = vmul.f32 %v126, %v128
    %v131 = vmul.f32 %v123, %v119
    %v132 = vmul.f32 %v124, %v120
    %v133 = vadd.f32 %v129, %v131
    %v134 = vadd.f32 %v130, %v132
    %v135 = vsub.f32 1.0, %v133
    %v136 = vsub.f32 1.0, %v134
    %v137 = vmul.f32 %v135, %v135
    %v138 = vmul.f32 %v136, %v136
    %v139 = vlog2.pop %v133
    %v140 = vmul.f32 %v139, 0.6931472
    %v141 = vlog2.pop %v134
    %v142 = vmul.f32 %v141, 0.6931472
    %v143 = vsub.f32 0.0, %v140
    %v144 = vsub.f32 0.0, %v142
    %v145 = vmul.f32 %v137, %v143
    %v146 = vmul.f32 %v138, %v144
    %v147 = vmul.f32 %v85, %v61
    %v148 = vmul.f32 %v100, %v62
    %v149 = vadd.f32 %v85, %v61
    %v150 = vadd.f32 %v100, %v62
    %v151 = vld [vmem:[#allocation7] sm:$0xff]
    %v152 = vld [vmem:[#allocation7 + $0x8] sm:$0xff]
    %v153 = vadd.f32 %v151, %v115
    %v154 = vadd.f32 %v152, %v116
    %155 = vst [vmem:[#allocation7] sm:$0xff] %v153
    %156 = vst [vmem:[#allocation7 + $0x8] sm:$0xff] %v154
    %v157 = vld [vmem:[#allocation8] sm:$0xff]
    %v158 = vld [vmem:[#allocation8 + $0x8] sm:$0xff]
    %v159 = vadd.f32 %v157, %v145
    %v160 = vadd.f32 %v158, %v146
    %161 = vst [vmem:[#allocation8] sm:$0xff] %v159
    %162 = vst [vmem:[#allocation8 + $0x8] sm:$0xff] %v160
    %v163 = vld [vmem:[#allocation10] sm:$0xff]
    %v164 = vld [vmem:[#allocation10 + $0x8] sm:$0xff]
    %v165 = vadd.f32 %v163, %v147
    %v166 = vadd.f32 %v164, %v148
    %167 = vst [vmem:[#allocation10] sm:$0xff] %v165
    %168 = vst [vmem:[#allocation10 + $0x8] sm:$0xff] %v166
    %v169 = vld [vmem:[#allocation11] sm:$0xff]
    %v170 = vld [vmem:[#allocation11 + $0x8] sm:$0xff]
    %v171 = vadd.f32 %v169, %v149
    %v172 = vadd.f32 %v170, %v150
    %173 = vst [vmem:[#allocation11] sm:$0xff] %v171
    %174 = vst [vmem:[#allocation11 + $0x8] sm:$0xff] %v172
    // Predicated region
    $region22: #{tpu_custom_call.1} parent=1 // pred_check
      _
    $region23: #{tpu_custom_call.1} parent=1 // pred_check_branch
      %176 = sbr.rel (0) target = $region25
    $region24: #{tpu_custom_call.1} parent=1 // pred_region
      %178 = vsyncadd [#allocation4], 0
      %s180 = sshll.u32 [#allocation7], 4
      %s181 = int_to_ptr.vmem [resolvable:$true] %s180
      %s182 = sshll.u32 %s2, 4
      %s183 = int_to_ptr.hbm [resolvable:$true] %s182
      %185 = dma.vmem_to_hbm [thread:$0]  %s181, 256, %s183, [#allocation4]
    $region25: #{tpu_custom_call.1} parent=1 // pred_fallthru
      _
    // Predicated region
    $region26: #{tpu_custom_call.1} parent=1 // pred_check
      _
    $region27: #{tpu_custom_call.1} parent=1 // pred_check_branch
      %187 = sbr.rel (0) target = $region29
    $region28: #{tpu_custom_call.1} parent=1 // pred_region
      %189 = vsyncadd [#allocation9], 0
      %s191 = sshll.u32 [#allocation8], 4
      %s192 = int_to_ptr.vmem [resolvable:$true] %s191
      %s193 = sshll.u32 %s3, 4
      %s194 = int_to_ptr.hbm [resolvable:$true] %s193
      %196 = dma.vmem_to_hbm [thread:$0]  %s192, 256, %s194, [#allocation9]
    $region29: #{tpu_custom_call.1} parent=1 // pred_fallthru
      _
    // Predicated region
    $region30: #{tpu_custom_call.1} parent=1 // pred_check
      _
    $region31: #{tpu_custom_call.1} parent=1 // pred_check_branch
      %198 = sbr.rel (0) target = $region33
    $region32: #{tpu_custom_call.1} parent=1 // pred_region
      %200 = vsyncadd [#allocation9], 0
      %s202 = sshll.u32 [#allocation10], 4
      %s203 = int_to_ptr.vmem [resolvable:$true] %s202
      %s204 = sshll.u32 %s4, 4
      %s205 = int_to_ptr.hbm [resolvable:$true] %s204
      %207 = dma.vmem_to_hbm [thread:$0]  %s203, 256, %s205, [#allocation9]
    $region33: #{tpu_custom_call.1} parent=1 // pred_fallthru
      _
    // Predicated region
    $region34: #{tpu_custom_call.1} parent=1 // pred_check
      _
    $region35: #{tpu_custom_call.1} parent=1 // pred_check_branch
      %209 = sbr.rel (0) target = $region37
    $region36: #{tpu_custom_call.1} parent=1 // pred_region
      %211 = vsyncadd [#allocation12], 0
      %s213 = sshll.u32 [#allocation11], 4
      %s214 = int_to_ptr.vmem [resolvable:$true] %s213
      %s215 = sshll.u32 %s5, 4
      %s216 = int_to_ptr.hbm [resolvable:$true] %s215
      %218 = dma.vmem_to_hbm [thread:$0]  %s214, 256, %s216, [#allocation12]
    $region37: #{tpu_custom_call.1} parent=1 // pred_fallthru
      _
    // Predicated region
    $region38: #{tpu_custom_call.1} parent=1 // pred_check
      _
    $region39: #{tpu_custom_call.1} parent=1 // pred_check_branch
      %220 = sbr.rel (0) target = $region41
    $region40: #{tpu_custom_call.1} parent=1 // pred_region
      %222 = dma.done [#allocation4], 256
    $region41: #{tpu_custom_call.1} parent=1 // pred_fallthru
      _
    // Predicated region
    $region42: #{tpu_custom_call.1} parent=1 // pred_check
      _
    $region43: #{tpu_custom_call.1} parent=1 // pred_check_branch
      %224 = sbr.rel (0) target = $region45
    $region44: #{tpu_custom_call.1} parent=1 // pred_region
      %226 = dma.done [#allocation9], 256
    $region45: #{tpu_custom_call.1} parent=1 // pred_fallthru
      _
    // Predicated region
    $region46: #{tpu_custom_call.1} parent=1 // pred_check
      _
    $region47: #{tpu_custom_call.1} parent=1 // pred_check_branch
      %228 = sbr.rel (0) target = $region49
    $region48: #{tpu_custom_call.1} parent=1 // pred_region
      %230 = dma.done [#allocation9], 256
    $region49: #{tpu_custom_call.1} parent=1 // pred_fallthru
      _
    // Predicated region
    $region50: #{tpu_custom_call.1} parent=1 // pred_check
      _
    $region51: #{tpu_custom_call.1} parent=1 // pred_check_branch
      %232 = sbr.rel (0) target = $region53
    $region52: #{tpu_custom_call.1} parent=1 // pred_region
      %234 = dma.done [#allocation12], 256
    $region53: #{tpu_custom_call.1} parent=1 // pred_fallthru
      _
    %235 = vsyncpa [#allocation3], 1
    %236 = vsyncpa [#allocation6], 1
    %237 = vsyncpa [#allocation4], 1
    %238 = vsyncpa [#allocation9], 1
    %239 = vsyncpa [#allocation12], 1

</llo_original>
